<compile_context>
chip_gen: v6e
topology: v6e:2x2x1
jax: 0.10.0
libtpu: 0.0.40
codegen_flags: <defaults>
</compile_context>

<pallas_src>
import jax
import jax.numpy as jnp
from jax.experimental import pallas as pl
from jax.experimental.pallas import tpu as pltpu


LANE_W = 512  # lane-dense last dim (multiple of 128); one row = 2 KiB of f32


def _crelu_kernel(xr_ref, xi_ref, or_ref, oi_ref):
    # Pure VPU work: independent ReLU on the real and imaginary planes.
    or_ref[...] = jnp.maximum(xr_ref[...], 0.0)
    oi_ref[...] = jnp.maximum(xi_ref[...], 0.0)


def _tile_m_max() -> int:
    """Per-generation cap on the row tile (rows of 512 f32)."""
    try:
        kind = jax.devices()[0].device_kind.lower()
    except Exception:
        return 1024
    if "v7" in kind:
        # 2 planes x 4 MiB blocks per grid step: amortizes the fixed per-step
        # cost against v7x's 3.2 TB/s HBM while staying well inside 64 MiB VMEM.
        return 2048
    # v5e / v6e (and unknown): 2 planes x 2 MiB blocks per grid step.
    return 1024


def _pick_tile_m(rows: int, cap: int) -> int:
    if rows <= cap:
        # Small/medium input.  Prefer >=2 blocks when cleanly splittable so both
        # v7x TensorCores get work; otherwise a single full-dim block (full-dim
        # blocks waive the 8-row divisibility rule, so no round-up pad needed).
        if rows >= 16 and rows % 16 == 0:
            return rows // 2
        return rows
    return cap  # large input; a partial last block is masked by Pallas


def _crelu_impl(x: jax.Array) -> jax.Array:
    assert x.dtype == jnp.complex64, "CReLU Pallas kernel expects complex64 input"
    # TODO(synk): complex128 would need float64 planes (poorly supported on TPU).

    orig_shape = x.shape
    total = x.size
    pad = (-total) % LANE_W            # 0 on the common path -> no extra HBM pass
    rows = (total + pad) // LANE_W

    cap = _tile_m_max()
    tile_m = _pick_tile_m(rows, cap)
    grid = (pl.cdiv(rows, tile_m),)
    # 2 inputs + 2 outputs, double-buffered: 8 x tile bytes of VMEM.
    vmem_limit = (48 << 20) if tile_m > 1024 else (32 << 20)

    def to_rows(plane):
        flat = plane.reshape(-1)       # contiguous reshape: free layout op
        if pad:
            # TODO(synk): handle the <512-float ragged tail with an in-kernel
            # masked store instead of this (rare) pad pass.
            flat = jnp.pad(flat, (0, pad))
        return flat.reshape(rows, LANE_W)

    xr = to_rows(jnp.real(x))
    xi = to_rows(jnp.imag(x))

    spec = pl.BlockSpec((tile_m, LANE_W), lambda i: (i, 0))
    o_re, o_im = pl.pallas_call(
        _crelu_kernel,
        out_shape=(jax.ShapeDtypeStruct((rows, LANE_W), jnp.float32),
                   jax.ShapeDtypeStruct((rows, LANE_W), jnp.float32)),
        grid=grid,
        in_specs=[spec, spec],
        out_specs=(spec, spec),
        compiler_params=pltpu.CompilerParams(
            dimension_semantics=("parallel",),
            vmem_limit_bytes=vmem_limit,
        ),
    )(xr, xi)

    def from_rows(o):
        flat = o.reshape(rows * LANE_W)
        if pad:
            flat = flat[:total]
        return flat.reshape(orig_shape)

    return jax.lax.complex(from_rows(o_re), from_rows(o_im))


crelu = jax.jit(_crelu_impl)


class CReLU:
    """JAX/Pallas port of torchcomplex CReLU. `inplace` has no meaning in JAX."""

    def __init__(self, inplace: bool = False):
        self.inplace = inplace  # kept for API parity; functional JAX is never in-place

    def __call__(self, x: jax.Array) -> jax.Array:
        return crelu(x)


if __name__ == "__main__":
    key = jax.random.PRNGKey(0)
    k_re, k_im = jax.random.split(key)
    N, C, H, W = 2, 4, 16, 16
    x_re = jax.random.normal(k_re, (N, C, H, W), dtype=jnp.float32)
    x_im = jax.random.normal(k_im, (N, C, H, W), dtype=jnp.float32)
    x = jax.lax.complex(x_re, x_im)  # complex64 NCHW input

    mod = CReLU()
    y = jax.block_until_ready(mod(x))

    # Reference check against plain-JAX semantics of crelu.
    y_ref = jax.lax.complex(jnp.maximum(x_re, 0.0), jnp.maximum(x_im, 0.0))
    assert y.shape == x.shape and y.dtype == x.dtype
    assert jnp.allclose(y, y_ref), "mismatch vs reference CReLU"

    print("KERNEL_OK")
</pallas_src>

<mosaic_0001>
module attributes {stable_mosaic.version = 11 : i64} {
  func.func @_crelu_kernel(%arg0: i32, %arg1: memref<4x512xf32, #tpu.memory_space<vmem>>, %arg2: memref<4x512xf32, #tpu.memory_space<vmem>>, %arg3: memref<4x512xf32, #tpu.memory_space<vmem>>, %arg4: memref<4x512xf32, #tpu.memory_space<vmem>>) attributes {dimension_semantics = [#tpu.dimension_semantics<parallel>], iteration_bounds = array<i64: 1>, scalar_prefetch = 0 : i64, scratch_operands = 0 : i64, tpu.core_type = #tpu.core_type<tc>, window_params = [{transform_indices = @transform_0, window_bounds = array<i64: 4, 512>}, {transform_indices = @transform_1, window_bounds = array<i64: 4, 512>}, {transform_indices = @transform_2, window_bounds = array<i64: 4, 512>}, {transform_indices = @transform_3, window_bounds = array<i64: 4, 512>}]} {
    %c0 = arith.constant 0 : index
    %c0_0 = arith.constant 0 : index
    %0 = vector.load %arg1[%c0, %c0_0] : memref<4x512xf32, #tpu.memory_space<vmem>>, vector<4x512xf32>
    %cst = arith.constant 0.000000e+00 : f32
    %1 = vector.broadcast %cst : f32 to vector<4x512xf32>
    %2 = arith.maximumf %0, %1 : vector<4x512xf32>
    %c0_1 = arith.constant 0 : index
    %c0_2 = arith.constant 0 : index
    %3 = vector.load %arg3[%c0_1, %c0_2] : memref<4x512xf32, #tpu.memory_space<vmem>>, vector<4x512xf32>
    tpu.vector_store %arg3[%c0_1, %c0_2], %2 {strides = array<i32>} : memref<4x512xf32, #tpu.memory_space<vmem>>, vector<4x512xf32>,
    %c0_3 = arith.constant 0 : index
    %c0_4 = arith.constant 0 : index
    %4 = vector.load %arg2[%c0_3, %c0_4] : memref<4x512xf32, #tpu.memory_space<vmem>>, vector<4x512xf32>
    %cst_5 = arith.constant 0.000000e+00 : f32
    %5 = vector.broadcast %cst_5 : f32 to vector<4x512xf32>
    %6 = arith.maximumf %4, %5 : vector<4x512xf32>
    %c0_6 = arith.constant 0 : index
    %c0_7 = arith.constant 0 : index
    %7 = vector.load %arg4[%c0_6, %c0_7] : memref<4x512xf32, #tpu.memory_space<vmem>>, vector<4x512xf32>
    tpu.vector_store %arg4[%c0_6, %c0_7], %6 {strides = array<i32>} : memref<4x512xf32, #tpu.memory_space<vmem>>, vector<4x512xf32>,
    return
  }
  func.func @transform_0(%arg0: i32) -> (i32, i32) {
    %c0_i32 = arith.constant 0 : i32
    %c0_i32_0 = arith.constant 0 : i32
    return %arg0, %c0_i32 : i32, i32
  }
  func.func @transform_1(%arg0: i32) -> (i32, i32) {
    %c0_i32 = arith.constant 0 : i32
    %c0_i32_0 = arith.constant 0 : i32
    return %arg0, %c0_i32 : i32, i32
  }
  func.func @transform_2(%arg0: i32) -> (i32, i32) {
    %c0_i32 = arith.constant 0 : i32
    %c0_i32_0 = arith.constant 0 : i32
    return %arg0, %c0_i32 : i32, i32
  }
  func.func @transform_3(%arg0: i32) -> (i32, i32) {
    %c0_i32 = arith.constant 0 : i32
    %c0_i32_0 = arith.constant 0 : i32
    return %arg0, %c0_i32 : i32, i32
  }
}

</mosaic_0001>

<llo_original>
// kernel: custom-call.1
$region0: #{custom-call.1}
  %s0 = inlined_call_operand.hbm [shape: c64[2,4,16,16], index: 0, kind: input, shape index: {}]
  %s1 = inlined_call_operand.vmem [shape: f32[2,4,16,16], index: 1, kind: output, shape index: {}]
  %s2 = scalar_lea.hbm %s0, 2048
  $region1: #{custom-call.1} parent=0
    #allocation0 [shape = 's32[1]{0}', space=sflag, size = 0x4, scoped, tag = 'scoped memory for custom-call.1']
    %3 = vsyncpa [#allocation0], 0
    %s4 = sshll.u32 %s1, 4
    %s5 = int_to_ptr.vmem [resolvable:$true] %s4
    %7 = dma.hbm_to_vmem [thread:$0]  %s2, 2048, %s5, [#allocation0]
    %8 = dma.done [#allocation0], 2048
    %9 = vsyncpa [#allocation0], 1

// kernel: custom-call
$region0: #{custom-call}
  %s0 = inlined_call_operand.hbm [shape: c64[2,4,16,16], index: 0, kind: input, shape index: {}]
  %s1 = inlined_call_operand.vmem [shape: f32[2,4,16,16], index: 1, kind: output, shape index: {}]
  $region1: #{custom-call} parent=0
    #allocation0 [shape = 's32[1]{0}', space=sflag, size = 0x4, scoped, tag = 'scoped memory for custom-call']
    %2 = vsyncpa [#allocation0], 0
    %s3 = sshll.u32 %s1, 4
    %s4 = int_to_ptr.vmem [resolvable:$true] %s3
    %6 = dma.hbm_to_vmem [thread:$0]  %s0, 2048, %s4, [#allocation0]
    %7 = dma.done [#allocation0], 2048
    %8 = vsyncpa [#allocation0], 1

// kernel: custom-call.2
$region0: #{custom-call.2}
  %s0 = inlined_call_operand.vmem [shape: f32[2,4,16,16], index: 0, kind: input, shape index: {}]
  %s1 = inlined_call_operand.vmem [shape: f32[2,4,16,16], index: 1, kind: input, shape index: {}]
  %s2 = inlined_call_operand.hbm [shape: c64[2,4,16,16], index: 2, kind: output, shape index: {}]
  %s3 = scalar_lea.hbm %s2, 2048
  $region1: #{custom-call.2} parent=0
    #allocation0 [shape = 's32[1]{0}', space=sflag, size = 0x4, scoped, tag = 'scoped memory for custom-call.2']
    %4 = vsyncpa [#allocation0], 0
    %s5 = sshll.u32 %s0, 4
    %s6 = int_to_ptr.vmem [resolvable:$true] %s5
    %8 = dma.vmem_to_hbm [thread:$0]  %s6, 2048, %s2, [#allocation0]
    %9 = dma.done [#allocation0], 2048
    %10 = vsyncpa [#allocation0], 1
  $region2: #{custom-call.2} parent=0
    #allocation1 [shape = 's32[1]{0}', space=sflag, size = 0x4, scoped, tag = 'scoped memory for custom-call.2']
    %11 = vsyncpa [#allocation1], 0
    %s12 = sshll.u32 %s1, 4
    %s13 = int_to_ptr.vmem [resolvable:$true] %s12
    %15 = dma.vmem_to_hbm [thread:$0]  %s13, 2048, %s3, [#allocation1]
    %16 = dma.done [#allocation1], 2048
    %17 = vsyncpa [#allocation1], 1

// kernel: _crelu_impl.1
$region0: #{_crelu_impl.1}
  #allocation0 [shape = 'u32[]', space=smem, size = 0x4, offset = 0x4, fixed_abs, tag = 'smem constant byte address 0x4 - core index']
  #allocation1 [shape = 'u32[144,128]{1,0:T(1,128)}', space=vmem, size = 0x12000, scoped, tag = 'internal scratch']
  %s0 = inlined_call_operand.vmem [shape: f32[4,512], index: 0, kind: input, shape index: {}]
  %s1 = inlined_call_operand.vmem [shape: f32[4,512], index: 1, kind: input, shape index: {}]
  %s2 = inlined_call_operand.vmem [shape: f32[4,512], index: 2, kind: output, shape index: {0}]
  %s3 = inlined_call_operand.vmem [shape: f32[4,512], index: 3, kind: output, shape index: {1}]
  %4 = xla_tuple %s2, %s3
  %s5 = sld [smem:[#allocation0]]
  $region26: #{_crelu_impl.1} parent=0
    _
  %s7 = ssub.s32 1, %s5
  %s8 = scalar_select 0, %s7, %s5
  // Predicated region
  $region2: #{_crelu_impl.1} parent=0 // pred_check
    _
  $region3: #{_crelu_impl.1} parent=0 // pred_check_branch
    %10 = sbr.rel (0) target = $region5
  $region4: #{_crelu_impl.1} parent=0 // pred_region
    _
  $region5: #{_crelu_impl.1} parent=0 // pred_fallthru
    _
  // Predicated region
  $region6: #{_crelu_impl.1} parent=0 // pred_check
    _
  $region7: #{_crelu_impl.1} parent=0 // pred_check_branch
    %12 = sbr.rel (0) target = $region9
  $region8: #{_crelu_impl.1} parent=0 // pred_region
    _
  $region9: #{_crelu_impl.1} parent=0 // pred_fallthru
    _
  %v13 = vld [vmem:[%s0] sm:$0xff]
  %v14 = vld [vmem:[%s0 + $0x8] sm:$0xff]
  %v15 = vmax.f32 %v13, 0.0
  %v16 = vmax.f32 %v14, 0.0
  %17 = vst [vmem:[%s2] sm:$0xff] %v15
  %18 = vst [vmem:[%s2 + $0x8] sm:$0xff] %v16
  %v19 = vld [vmem:[%s1] sm:$0xff]
  %v20 = vld [vmem:[%s1 + $0x8] sm:$0xff]
  %v21 = vmax.f32 %v19, 0.0
  %v22 = vmax.f32 %v20, 0.0
  %23 = vst [vmem:[%s3] sm:$0xff] %v21
  %24 = vst [vmem:[%s3 + $0x8] sm:$0xff] %v22
  // Predicated region
  $region10: #{_crelu_impl.1} parent=0 // pred_check
    _
  $region11: #{_crelu_impl.1} parent=0 // pred_check_branch
    %26 = sbr.rel (0) target = $region13
  $region12: #{_crelu_impl.1} parent=0 // pred_region
    _
  $region13: #{_crelu_impl.1} parent=0 // pred_fallthru
    _
  // Predicated region
  $region14: #{_crelu_impl.1} parent=0 // pred_check
    _
  $region15: #{_crelu_impl.1} parent=0 // pred_check_branch
    %28 = sbr.rel (0) target = $region17
  $region16: #{_crelu_impl.1} parent=0 // pred_region
    _
  $region17: #{_crelu_impl.1} parent=0 // pred_fallthru
    _
  // Predicated region
  $region18: #{_crelu_impl.1} parent=0 // pred_check
    _
  $region19: #{_crelu_impl.1} parent=0 // pred_check_branch
    %30 = sbr.rel (0) target = $region21
  $region20: #{_crelu_impl.1} parent=0 // pred_region
    _
  $region21: #{_crelu_impl.1} parent=0 // pred_fallthru
    _
  // Predicated region
  $region22: #{_crelu_impl.1} parent=0 // pred_check
    _
  $region23: #{_crelu_impl.1} parent=0 // pred_check_branch
    %32 = sbr.rel (0) target = $region25
  $region24: #{_crelu_impl.1} parent=0 // pred_region
    _
  $region25: #{_crelu_impl.1} parent=0 // pred_fallthru
    _

</llo_original>
